<compile_context>
chip_gen: v6e
topology: v6e:2x2x1
jax: 0.10.0
libtpu: 0.0.40
codegen_flags: <defaults>
</compile_context>

<pallas_src>
import jax
import jax.numpy as jnp
from jax.experimental import pallas as pl
from jax.experimental.pallas import tpu as pltpu

D_PAD = 128  # lane-dense width for the resident weight/bias stacks


def _round_up(n, m):
    return ((n + m - 1) // m) * m


def _flatten_mlp_kernel(x_ref, w_ref, b_ref, o_ref):
    # x_ref: (TB, d_in)   -- narrow, full-last-dim block (no lane pad in HBM)
    # w_ref: (L, 128, 128) f32/bf16, resident across the grid
    # b_ref: (L, 1, 128)   f32, resident across the grid
    # o_ref: (TB, out_dim) -- narrow, full-last-dim output block
    n_layers = w_ref.shape[0]
    d_in = x_ref.shape[1]
    out_dim = o_ref.shape[1]
    cdt = w_ref.dtype  # MXU operand dtype (f32 or bf16)

    # Folded (input_layer @ first embed linear): contract over the real d_in.
    h = jnp.dot(x_ref[...].astype(cdt), w_ref[0][:d_in, :],
                preferred_element_type=jnp.float32) + b_ref[0]
    for l in range(1, n_layers):          # static unroll; n_layers is tiny
        h = jnp.maximum(h, 0.0)           # ReLU between hidden linears (f32 VPU)
        h = jnp.dot(h.astype(cdt), w_ref[l],
                    preferred_element_type=jnp.float32) + b_ref[l]
    o_ref[...] = h[:, :out_dim].astype(o_ref.dtype)


def pack_params(params, weight_dtype=jnp.float32):
    """Fold input_layer into the first embed linear and pack all layers into
    two lane-padded stacked arrays (done once, outside the kernel).
    weight_dtype=jnp.bfloat16 halves weight HBM traffic on v6e/v7x; biases and
    all elementwise work stay f32."""
    (w0, b0), (w1, b1) = params[0], params[1]
    hi = jax.lax.Precision.HIGHEST
    w01 = jnp.dot(w0, w1, precision=hi)          # (d_in, h1)
    b01 = jnp.dot(b0, w1, precision=hi) + b1     # (1, h1)
    layers = [(w01, b01)] + list(params[2:])

    ws, bs = [], []
    for w, b in layers:
        ws.append(jnp.pad(w, ((0, D_PAD - w.shape[0]), (0, D_PAD - w.shape[1]))))
        bs.append(jnp.pad(b, ((0, 0), (0, D_PAD - b.shape[1]))))
    w_stack = jnp.stack(ws).astype(weight_dtype)  # (L, 128, 128)
    b_stack = jnp.stack(bs)                       # (L, 1, 128) f32
    out_dim = params[-1][0].shape[1]
    return w_stack, b_stack, out_dim


def _pick_batch_tile(B, cap=1024):
    """Large tiles for DMA efficiency (~0.35us/grid-step overhead), but keep
    >= 2 grid tiles when possible so v7x can spread the 'parallel' axis over
    both TensorCores."""
    B8 = _round_up(B, 8)
    TB = min(B8, cap)
    if TB >= B8 and B8 >= 16:
        TB = _round_up(pl.cdiv(B8, 2), 8)
    B_pad = _round_up(B8, TB)
    return TB, B_pad


def flatten_forward(x, w_stack, b_stack, out_dim, *, tb_cap=1024):
    """x: (batch, input_len) f32. w_stack/b_stack from pack_params."""
    B, d_in = x.shape
    TB, B_pad = _pick_batch_tile(B, tb_cap)
    padded = B_pad != B
    if padded:  # only touch HBM with a pad op when the tile doesn't divide B
        x = jnp.pad(x, ((0, B_pad - B), (0, 0)))

    out = pl.pallas_call(
        _flatten_mlp_kernel,
        out_shape=jax.ShapeDtypeStruct((B_pad, out_dim), jnp.float32),
        grid_spec=pltpu.PrefetchScalarGridSpec(
            num_scalar_prefetch=0,
            grid=(B_pad // TB,),
            in_specs=[
                pl.BlockSpec((TB, d_in), lambda i: (i, 0)),          # narrow x tile
                pl.BlockSpec(w_stack.shape, lambda i: (0, 0, 0)),    # weights resident
                pl.BlockSpec(b_stack.shape, lambda i: (0, 0, 0)),    # biases resident
            ],
            out_specs=pl.BlockSpec((TB, out_dim), lambda i: (i, 0)), # narrow out tile
        ),
        compiler_params=pltpu.CompilerParams(
            dimension_semantics=("parallel",)),  # v7x: batch tiles over 2 TCs
    )(x, w_stack, b_stack)

    return out[:B] if padded else out


def init_params(key, layer_dims):
    """Deterministic Linear params for each consecutive (in, out) pair."""
    params = []
    for din, dout in zip(layer_dims[:-1], layer_dims[1:]):
        kw, kb, key = jax.random.split(key, 3)
        scale = 1.0 / jnp.sqrt(jnp.float32(din))
        w = jax.random.uniform(kw, (din, dout), jnp.float32, -scale, scale)
        b = jax.random.uniform(kb, (1, dout), jnp.float32, -scale, scale)
        params.append((w, b))
    return params


def reference_forward(x, params):
    (w0, b0) = params[0]
    h = x @ w0 + b0                       # input_layer, activation=None
    for i, (w, b) in enumerate(params[1:]):
        h = h @ w + b
        if i < len(params) - 2:           # ReLU between embed hidden layers
            h = jnp.maximum(h, 0.0)
    return h


if __name__ == "__main__":
    input_len = 32
    input_layer_unit = 64
    embedded_layers = [64, 64]
    embed_feature_len = 32
    batch = 512   # exercises the batch grid axis (2 tiles of 256 rows)

    layer_dims = [input_len, input_layer_unit] + embedded_layers + [embed_feature_len]

    key = jax.random.PRNGKey(0)
    kx, kp = jax.random.split(key)
    x = jax.random.normal(kx, (batch, input_len), jnp.float32)
    params = init_params(kp, layer_dims)

    ref = reference_forward(x, params)

    # f32 path: exact module semantics (tight tolerance).
    w_stack, b_stack, out_dim = pack_params(params, weight_dtype=jnp.float32)
    out = jax.block_until_ready(flatten_forward(x, w_stack, b_stack, out_dim))
    assert out.shape == (batch, embed_feature_len)
    assert jnp.allclose(out, ref, atol=1e-4, rtol=1e-4), "f32 mismatch vs reference"

    # bf16-weight path (v6e/v7x traffic optimization): f32 accumulation,
    # loose tolerance as bf16 operands change rounding.
    w_bf, b_bf, _ = pack_params(params, weight_dtype=jnp.bfloat16)
    out_bf = jax.block_until_ready(flatten_forward(x, w_bf, b_bf, out_dim))
    assert out_bf.shape == (batch, embed_feature_len)
    assert jnp.allclose(out_bf, ref, atol=1e-1, rtol=1e-1), "bf16 mismatch vs reference"

    print("KERNEL_OK")
</pallas_src>

<mosaic_0001>
module attributes {stable_mosaic.version = 11 : i64} {
  func.func @_flatten_mlp_kernel(%arg0: i32, %arg1: memref<256x32xf32, #tpu.memory_space<vmem>>, %arg2: memref<3x128x128xf32, #tpu.memory_space<vmem>>, %arg3: memref<3x1x128xf32, #tpu.memory_space<vmem>>, %arg4: memref<256x32xf32, #tpu.memory_space<vmem>>) attributes {dimension_semantics = [#tpu.dimension_semantics<parallel>], iteration_bounds = array<i64: 2>, scalar_prefetch = 0 : i64, scratch_operands = 0 : i64, tpu.core_type = #tpu.core_type<tc>, window_params = [{transform_indices = @transform_0, window_bounds = array<i64: 256, 32>}, {pipeline_mode = #tpu.pipeline_mode<synchronous>, transform_indices = @transform_1, window_bounds = array<i64: 3, 128, 128>}, {pipeline_mode = #tpu.pipeline_mode<synchronous>, transform_indices = @transform_2, window_bounds = array<i64: 3, 1, 128>}, {transform_indices = @transform_3, window_bounds = array<i64: 256, 32>}]} {
    %c0 = arith.constant 0 : index
    %c0_0 = arith.constant 0 : index
    %0 = vector.load %arg1[%c0, %c0_0] : memref<256x32xf32, #tpu.memory_space<vmem>>, vector<256x32xf32>
    %c0_1 = arith.constant 0 : index
    %c0_2 = arith.constant 0 : index
    %c0_3 = arith.constant 0 : index
    %1 = vector.load %arg2[%c0_1, %c0_2, %c0_3] : memref<3x128x128xf32, #tpu.memory_space<vmem>>, vector<1x128x128xf32>
    %2 = vector.shape_cast %1 : vector<1x128x128xf32> to vector<128x128xf32>
    %3 = vector.extract_strided_slice %2 {offsets = [0, 0], sizes = [32, 128], strides = [1, 1]} : vector<128x128xf32> to vector<32x128xf32>
    %cst = arith.constant dense<0.000000e+00> : vector<256x128xf32>
    %4 = tpu.matmul %0, %3, %cst {dimension_numbers = #tpu.dot_dimension_numbers<[1], [0], [0], [1], [0, 0, 1, 1], [], []>} : vector<256x32xf32>, vector<32x128xf32>, vector<256x128xf32> -> vector<256x128xf32>
    %c0_4 = arith.constant 0 : index
    %c0_5 = arith.constant 0 : index
    %c0_6 = arith.constant 0 : index
    %5 = vector.load %arg3[%c0_4, %c0_5, %c0_6] : memref<3x1x128xf32, #tpu.memory_space<vmem>>, vector<1x1x128xf32>
    %6 = vector.shape_cast %5 : vector<1x1x128xf32> to vector<1x128xf32>
    %7 = vector.broadcast %6 : vector<1x128xf32> to vector<256x128xf32>
    %8 = arith.addf %4, %7 : vector<256x128xf32>
    %cst_7 = arith.constant 0.000000e+00 : f32
    %9 = vector.broadcast %cst_7 : f32 to vector<256x128xf32>
    %10 = arith.maximumf %8, %9 : vector<256x128xf32>
    %c1 = arith.constant 1 : index
    %c0_8 = arith.constant 0 : index
    %c0_9 = arith.constant 0 : index
    %11 = vector.load %arg2[%c1, %c0_8, %c0_9] : memref<3x128x128xf32, #tpu.memory_space<vmem>>, vector<1x128x128xf32>
    %12 = vector.shape_cast %11 : vector<1x128x128xf32> to vector<128x128xf32>
    %cst_10 = arith.constant dense<0.000000e+00> : vector<256x128xf32>
    %13 = tpu.matmul %10, %12, %cst_10 {dimension_numbers = #tpu.dot_dimension_numbers<[1], [0], [0], [1], [0, 0, 1, 1], [], []>} : vector<256x128xf32>, vector<128x128xf32>, vector<256x128xf32> -> vector<256x128xf32>
    %c1_11 = arith.constant 1 : index
    %c0_12 = arith.constant 0 : index
    %c0_13 = arith.constant 0 : index
    %14 = vector.load %arg3[%c1_11, %c0_12, %c0_13] : memref<3x1x128xf32, #tpu.memory_space<vmem>>, vector<1x1x128xf32>
    %15 = vector.shape_cast %14 : vector<1x1x128xf32> to vector<1x128xf32>
    %16 = vector.broadcast %15 : vector<1x128xf32> to vector<256x128xf32>
    %17 = arith.addf %13, %16 : vector<256x128xf32>
    %cst_14 = arith.constant 0.000000e+00 : f32
    %18 = vector.broadcast %cst_14 : f32 to vector<256x128xf32>
    %19 = arith.maximumf %17, %18 : vector<256x128xf32>
    %c2 = arith.constant 2 : index
    %c0_15 = arith.constant 0 : index
    %c0_16 = arith.constant 0 : index
    %20 = vector.load %arg2[%c2, %c0_15, %c0_16] : memref<3x128x128xf32, #tpu.memory_space<vmem>>, vector<1x128x128xf32>
    %21 = vector.shape_cast %20 : vector<1x128x128xf32> to vector<128x128xf32>
    %cst_17 = arith.constant dense<0.000000e+00> : vector<256x128xf32>
    %22 = tpu.matmul %19, %21, %cst_17 {dimension_numbers = #tpu.dot_dimension_numbers<[1], [0], [0], [1], [0, 0, 1, 1], [], []>} : vector<256x128xf32>, vector<128x128xf32>, vector<256x128xf32> -> vector<256x128xf32>
    %c2_18 = arith.constant 2 : index
    %c0_19 = arith.constant 0 : index
    %c0_20 = arith.constant 0 : index
    %23 = vector.load %arg3[%c2_18, %c0_19, %c0_20] : memref<3x1x128xf32, #tpu.memory_space<vmem>>, vector<1x1x128xf32>
    %24 = vector.shape_cast %23 : vector<1x1x128xf32> to vector<1x128xf32>
    %25 = vector.broadcast %24 : vector<1x128xf32> to vector<256x128xf32>
    %26 = arith.addf %22, %25 : vector<256x128xf32>
    %27 = vector.extract_strided_slice %26 {offsets = [0, 0], sizes = [256, 32], strides = [1, 1]} : vector<256x128xf32> to vector<256x32xf32>
    %c0_21 = arith.constant 0 : index
    %c0_22 = arith.constant 0 : index
    %28 = vector.load %arg4[%c0_21, %c0_22] : memref<256x32xf32, #tpu.memory_space<vmem>>, vector<256x32xf32>
    tpu.vector_store %arg4[%c0_21, %c0_22], %27 {strides = array<i32>} : memref<256x32xf32, #tpu.memory_space<vmem>>, vector<256x32xf32>,
    return
  }
  func.func @transform_0(%arg0: i32) -> (i32, i32) {
    %c0_i32 = arith.constant 0 : i32
    %c0_i32_0 = arith.constant 0 : i32
    return %arg0, %c0_i32 : i32, i32
  }
  func.func @transform_1(%arg0: i32) -> (i32, i32, i32) {
    %c0_i32 = arith.constant 0 : i32
    %c0_i32_0 = arith.constant 0 : i32
    %c0_i32_1 = arith.constant 0 : i32
    %c0_i32_2 = arith.constant 0 : i32
    return %c0_i32, %c0_i32_0, %c0_i32_1 : i32, i32, i32
  }
  func.func @transform_2(%arg0: i32) -> (i32, i32, i32) {
    %c0_i32 = arith.constant 0 : i32
    %c0_i32_0 = arith.constant 0 : i32
    %c0_i32_1 = arith.constant 0 : i32
    %c0_i32_2 = arith.constant 0 : i32
    return %c0_i32, %c0_i32_0, %c0_i32_1 : i32, i32, i32
  }
  func.func @transform_3(%arg0: i32) -> (i32, i32) {
    %c0_i32 = arith.constant 0 : i32
    %c0_i32_0 = arith.constant 0 : i32
    return %arg0, %c0_i32 : i32, i32
  }
}

</mosaic_0001>

<llo_original>
// kernel: tpu_custom_call.1
$region0: #{tpu_custom_call.1}
  #allocation0 [shape = 'u32[]', space=smem, size = 0x4, offset = 0x4, fixed_abs, tag = 'smem constant byte address 0x4 - core index']
  #allocation1 [shape = 'u32[144,128]{1,0:T(1,128)}', space=vmem, size = 0x12000, scoped, tag = 'internal scratch']
  %s0 = inlined_call_operand.vmem [shape: f32[512,32], index: 0, kind: input, shape index: {}]
  %s1 = inlined_call_operand.vmem [shape: f32[3,128,128], index: 1, kind: input, shape index: {}]
  %s2 = inlined_call_operand.vmem [shape: f32[3,1,128], index: 2, kind: input, shape index: {}]
  %s3 = inlined_call_operand.vmem [shape: f32[512,32], index: 3, kind: output, shape index: {}]
  %s4 = sld [smem:[#allocation0]]
  $region45: #{tpu_custom_call.1} parent=0
    _
  %s6 = ssub.s32 1, %s4
  %s7 = scalar_select 0, %s6, %s4
  loop: start=0, step=1, limit=4
  $region2: #{tpu_custom_call.1} parent=0 // loop_pre_header
    _
  $region3: #{tpu_custom_call.1} parent=0 // loop_header
    %s9 = sphi 0, %s13
    %p10 = scmp.ge.s32.totalorder %s9, 4
    %s19 = sphi 0, %s21
    %s22 = sphi 0, %s19
    %s23 = sphi 0, %s22
    %s39 = sphi 0, %s23
    %s43 = sphi 0, %s43
    %s45 = sphi 0, %s43
    %s46 = sphi 0, %s45
    %s60 = sphi 0, %s46
    %s64 = sphi 0, %s64
    %s66 = sphi 0, %s64
    %s67 = sphi 0, %s66
    %s81 = sphi 0, %s67
    %s87 = sphi 0, %s89
    %s90 = sphi 0, %s87
    %s91 = sphi 0, %s90
    %s107 = sphi 0, %s91
  $region4: #{tpu_custom_call.1} parent=0 // loop_header_branch
    %12 = sbr.rel (%p10) target = $region8
  $region5: #{tpu_custom_call.1} parent=0 // loop_body
    %s14 = ssub.s32 %s9, 1
    %s15 = ssub.s32 %s9, 2
    %s16 = sadd.s32 %s9, 1
    %s17 = ssub.s32 %s9, %s16
    %p18 = scmp.eq.s32.totalorder %s17, 0
    %s20 = sadd.s32 %s19, 1
    %s21 = scalar_select %p18, %s19, %s20
    %p24 = pneg %p18
    %p25 = scmp.eq.s32.totalorder %s9, 1
    %p26 = por %p24, %p25
    %p27 = scmp.ne.s32.totalorder %s19, %s22
    %p28 = scmp.eq.s32.totalorder %s9, 0
    %p29 = por %p27, %p28
    %p30 = scmp.ne.s32.totalorder %s19, %s22
    %p31 = scmp.eq.s32.totalorder %s14, 1
    %p32 = por %p30, %p31
    %p33 = scmp.ne.s32.totalorder %s22, %s23
    %p34 = scmp.eq.s32.totalorder %s14, 0
    %p35 = por %p33, %p34
    %p36 = scmp.ne.s32.totalorder %s22, %s23
    %p37 = scmp.eq.s32.totalorder %s15, 1
    %p38 = por %p36, %p37
    %p40 = scmp.ne.s32.totalorder %s23, %s39
    %p41 = scmp.eq.s32.totalorder %s15, 0
    %p42 = por %p40, %p41
    %s44 = sadd.s32 %s43, 1
    %p47 = scmp.eq.s32.totalorder %s9, 1
    %p48 = scmp.ne.s32.totalorder %s43, %s45
    %p49 = scmp.eq.s32.totalorder %s9, 0
    %p50 = por %p48, %p49
    %p51 = scmp.ne.s32.totalorder %s43, %s45
    %p52 = scmp.eq.s32.totalorder %s14, 1
    %p53 = por %p51, %p52
    %p54 = scmp.ne.s32.totalorder %s45, %s46
    %p55 = scmp.eq.s32.totalorder %s14, 0
    %p56 = por %p54, %p55
    %p57 = scmp.ne.s32.totalorder %s45, %s46
    %p58 = scmp.eq.s32.totalorder %s15, 1
    %p59 = por %p57, %p58
    %p61 = scmp.ne.s32.totalorder %s46, %s60
    %p62 = scmp.eq.s32.totalorder %s15, 0
    %p63 = por %p61, %p62
    %s65 = sadd.s32 %s64, 1
    %p68 = scmp.eq.s32.totalorder %s9, 1
    %p69 = scmp.ne.s32.totalorder %s64, %s66
    %p70 = scmp.eq.s32.totalorder %s9, 0
    %p71 = por %p69, %p70
    %p72 = scmp.ne.s32.totalorder %s64, %s66
    %p73 = scmp.eq.s32.totalorder %s14, 1
    %p74 = por %p72, %p73
    %p75 = scmp.ne.s32.totalorder %s66, %s67
    %p76 = scmp.eq.s32.totalorder %s14, 0
    %p77 = por %p75, %p76
    %p78 = scmp.ne.s32.totalorder %s66, %s67
    %p79 = scmp.eq.s32.totalorder %s15, 1
    %p80 = por %p78, %p79
    %p82 = scmp.ne.s32.totalorder %s67, %s81
    %p83 = scmp.eq.s32.totalorder %s15, 0
    %p84 = por %p82, %p83
    %s85 = ssub.s32 %s9, %s16
    %p86 = scmp.eq.s32.totalorder %s85, 0
    %s88 = sadd.s32 %s87, 1
    %s89 = scalar_select %p86, %s87, %s88
    %p92 = pneg %p86
    %p93 = scmp.eq.s32.totalorder %s9, 1
    %p94 = por %p92, %p93
    %p95 = scmp.ne.s32.totalorder %s87, %s90
    %p96 = scmp.eq.s32.totalorder %s9, 0
    %p97 = por %p95, %p96
    %p98 = scmp.ne.s32.totalorder %s87, %s90
    %p99 = scmp.eq.s32.totalorder %s14, 1
    %p100 = por %p98, %p99
    %p101 = scmp.ne.s32.totalorder %s90, %s91
    %p102 = scmp.eq.s32.totalorder %s14, 0
    %p103 = por %p101, %p102
    %p104 = scmp.ne.s32.totalorder %s90, %s91
    %p105 = scmp.eq.s32.totalorder %s15, 1
    %p106 = por %p104, %p105
    %p108 = scmp.ne.s32.totalorder %s91, %s107
    %p109 = scmp.eq.s32.totalorder %s15, 0
    %p110 = por %p108, %p109
    %p111 = scmp.le.s32.totalorder 1, %s9
    %p112 = scmp.lt.s32.totalorder %s9, 3
    %p113 = pnand %p111, %p112
    %p114 = pneg %p113
    // Predicated region
    $region9: #{tpu_custom_call.1} parent=5 // pred_check
      _
    $region10: #{tpu_custom_call.1} parent=5 // pred_check_branch
      %116 = sbr.rel (%p113) target = $region12
    $region11: #{tpu_custom_call.1} parent=5 // pred_region
      %s117 = ssub.s32 %s9, 1
      // Predicated region
      $region13: #{tpu_custom_call.1} parent=11 // pred_check
        %p118 = pneg %p56
      $region14: #{tpu_custom_call.1} parent=11 // pred_check_branch
        %120 = sbr.rel (%p118) target = $region16
      $region15: #{tpu_custom_call.1} parent=11 // pred_region
        _
      $region16: #{tpu_custom_call.1} parent=11 // pred_fallthru
        _
      // Predicated region
      $region17: #{tpu_custom_call.1} parent=11 // pred_check
        %p121 = pneg %p77
      $region18: #{tpu_custom_call.1} parent=11 // pred_check_branch
        %123 = sbr.rel (%p121) target = $region20
      $region19: #{tpu_custom_call.1} parent=11 // pred_region
        _
      $region20: #{tpu_custom_call.1} parent=11 // pred_fallthru
        _
    $region12: #{tpu_custom_call.1} parent=5 // pred_fallthru
      _
    %p124 = scmp.lt.s32.totalorder %s9, 2
    // Predicated region
    $region21: #{tpu_custom_call.1} parent=5 // pred_check
      %p125 = pneg %p124
    $region22: #{tpu_custom_call.1} parent=5 // pred_check_branch
      %127 = sbr.rel (%p125) target = $region24
    $region23: #{tpu_custom_call.1} parent=5 // pred_region
      // Predicated region
      $region25: #{tpu_custom_call.1} parent=23 // pred_check
        %p128 = pneg %p29
      $region26: #{tpu_custom_call.1} parent=23 // pred_check_branch
        %130 = sbr.rel (%p128) target = $region28
      $region27: #{tpu_custom_call.1} parent=23 // pred_region
        %s131 = smul.u32 32, %s9
        %p132 = scmp.lt.s32.totalorder %s131, 63
        %s133 = scalar_select %p132, %s131, 63
        %s134 = smul.addr %s133, 8
        %s135 = scalar_lea.vmem %s0, %s134
        %s136 = smul.u32 32, %s9
      $region28: #{tpu_custom_call.1} parent=23 // pred_fallthru
        _
    $region24: #{tpu_custom_call.1} parent=5 // pred_fallthru
      _
    %p137 = scmp.le.s32.totalorder 1, %s9
    %p138 = scmp.lt.s32.totalorder %s9, 3
    %p139 = pnand %p137, %p138
    %p140 = pneg %p139
    // Predicated region
    $region29: #{tpu_custom_call.1} parent=5 // pred_check
      _
    $region30: #{tpu_custom_call.1} parent=5 // pred_check_branch
      %142 = sbr.rel (%p139) target = $region32
    $region31: #{tpu_custom_call.1} parent=5 // pred_region
      %s143 = ssub.s32 %s9, 1
      %s144 = smul.u32 32, %s14
      %p145 = scmp.lt.s32.totalorder %s144, 63
      %s146 = scalar_select %p145, %s144, 63
      %s147 = smul.addr %s146, 8
      %s148 = scalar_lea.vmem %s0, %s147
      %p149 = pneg %p35
      %p150 = pneg %p32
      %p151 = pneg %p56
      %p152 = pneg %p53
      %p153 = pneg %p77
      %p154 = pneg %p74
      %p155 = pneg %p103
      %p156 = pneg %p100
      %s157 = smul.u32 32, %s14
      %p158 = scmp.lt.s32.totalorder %s157, 63
      %s159 = scalar_select %p158, %s157, 63
      %s160 = smul.addr %s159, 8
      %s161 = scalar_lea.vmem %s3, %s160
      %s162 = smul.u32 32, %s14
      %p163 = scmp.lt.s32.totalorder %s162, 63
      %s164 = scalar_select %p163, %s162, 63
      %s165 = smul.addr %s164, 8
      %s166 = scalar_lea.vmem %s0, %s165
      %s167 = smul.u32 32, %s14
      %s168 = smul.u32 32, %s14
      %p169 = scmp.lt.s32.totalorder %s168, 63
      %s170 = scalar_select %p169, %s168, 63
      %s171 = smul.addr %s170, 8
      %s172 = scalar_lea.vmem %s3, %s171
      %s173 = smul.u32 32, %s14
      %v174 = vld [vmem:[%s166] sm:$0xff]
      %v175 = vld [vmem:[%s166 + $0x8] sm:$0xff]
      %v176 = vld [vmem:[%s166 + $0x10] sm:$0xff]
      %v177 = vld [vmem:[%s166 + $0x18] sm:$0xff]
      %v178 = vld [vmem:[%s166 + $0x20] sm:$0xff]
      %v179 = vld [vmem:[%s166 + $0x28] sm:$0xff]
      %v180 = vld [vmem:[%s166 + $0x30] sm:$0xff]
      %v181 = vld [vmem:[%s166 + $0x38] sm:$0xff]
      %v182 = vld [vmem:[%s166 + $0x40] sm:$0xff]
      %v183 = vld [vmem:[%s166 + $0x48] sm:$0xff]
      %v184 = vld [vmem:[%s166 + $0x50] sm:$0xff]
      %v185 = vld [vmem:[%s166 + $0x58] sm:$0xff]
      %v186 = vld [vmem:[%s166 + $0x60] sm:$0xff]
      %v187 = vld [vmem:[%s166 + $0x68] sm:$0xff]
      %v188 = vld [vmem:[%s166 + $0x70] sm:$0xff]
      %v189 = vld [vmem:[%s166 + $0x78] sm:$0xff]
      %v190 = vld [vmem:[%s166 + $0x80] sm:$0xff]
      %v191 = vld [vmem:[%s166 + $0x88] sm:$0xff]
      %v192 = vld [vmem:[%s166 + $0x90] sm:$0xff]
      %v193 = vld [vmem:[%s166 + $0x98] sm:$0xff]
      %v194 = vld [vmem:[%s166 + $0xa0] sm:$0xff]
      %v195 = vld [vmem:[%s166 + $0xa8] sm:$0xff]
      %v196 = vld [vmem:[%s166 + $0xb0] sm:$0xff]
      %v197 = vld [vmem:[%s166 + $0xb8] sm:$0xff]
      %v198 = vld [vmem:[%s166 + $0xc0] sm:$0xff]
      %v199 = vld [vmem:[%s166 + $0xc8] sm:$0xff]
      %v200 = vld [vmem:[%s166 + $0xd0] sm:$0xff]
      %v201 = vld [vmem:[%s166 + $0xd8] sm:$0xff]
      %v202 = vld [vmem:[%s166 + $0xe0] sm:$0xff]
      %v203 = vld [vmem:[%s166 + $0xe8] sm:$0xff]
      %v204 = vld [vmem:[%s166 + $0xf0] sm:$0xff]
      %v205 = vld [vmem:[%s166 + $0xf8] sm:$0xff]
      %v206 = vld [vmem:[%s1] sm:$0xff]
      %v207 = vld [vmem:[%s1 + $0x8] sm:$0xff]
      %v208 = vld [vmem:[%s1 + $0x10] sm:$0xff]
      %v209 = vld [vmem:[%s1 + $0x18] sm:$0xff]
      %v210 = vld [vmem:[%s2] sm:$0x1]
      %v212 = vlaneseq
      %v213 = vshrl.u32 %v212, 7
      %v214 = vsub.s32 0, %v213
      %v215 = vrot.slane %v210, %v214
      %vm217 = vcmask 261120
      %v219 = vsel %vm217, %v174, 0
      %v222 = vsel %vm217, %v175, 0
      %v225 = vsel %vm217, %v176, 0
      %v228 = vsel %vm217, %v177, 0
      %v231 = vsel %vm217, %v178, 0
      %v234 = vsel %vm217, %v179, 0
      %v237 = vsel %vm217, %v180, 0
      %v240 = vsel %vm217, %v181, 0
      %v243 = vsel %vm217, %v182, 0
      %v246 = vsel %vm217, %v183, 0
      %v249 = vsel %vm217, %v184, 0
      %v252 = vsel %vm217, %v185, 0
      %v255 = vsel %vm217, %v186, 0
      %v258 = vsel %vm217, %v187, 0
      %v261 = vsel %vm217, %v188, 0
      %v264 = vsel %vm217, %v189, 0
      %v267 = vsel %vm217, %v190, 0
      %v270 = vsel %vm217, %v191, 0
      %v273 = vsel %vm217, %v192, 0
      %v276 = vsel %vm217, %v193, 0
      %v279 = vsel %vm217, %v194, 0
      %v282 = vsel %vm217, %v195, 0
      %v285 = vsel %vm217, %v196, 0
      %v288 = vsel %vm217, %v197, 0
      %v291 = vsel %vm217, %v198, 0
      %v294 = vsel %vm217, %v199, 0
      %v297 = vsel %vm217, %v200, 0
      %v300 = vsel %vm217, %v201, 0
      %v303 = vsel %vm217, %v202, 0
      %v306 = vsel %vm217, %v203, 0
      %v309 = vsel %vm217, %v204, 0
      %v312 = vsel %vm217, %v205, 0
      %314 = vmatprep.subr.mxu0 0.0
      %315 = vmatpush1.msra.mxu0 0.0
      %316 = vmatprep.subr.mxu0 0.0
      %317 = vmatpush1.msra.mxu0 0.0
      %318 = vmatprep.subr.mxu0 0.0
      %319 = vmatpush1.msra.mxu0 0.0
      %320 = vmatprep.subr.mxu0 0.0
      %321 = vmatpush1.msra.mxu0 0.0
      %322 = vmatprep.subr.mxu0 0.0
      %323 = vmatpush1.msra.mxu0 0.0
      %324 = vmatprep.subr.mxu0 0.0
      %325 = vmatpush1.msra.mxu0 0.0
      %326 = vmatprep.subr.mxu0 0.0
      %327 = vmatpush1.msra.mxu0 0.0
      %328 = vmatprep.subr.mxu0 0.0
      %329 = vmatpush1.msra.mxu0 0.0
      %330 = vmatprep.subr.mxu0 0.0
      %331 = vmatpush1.msra.mxu0 0.0
      %332 = vmatprep.subr.mxu0 0.0
      %333 = vmatpush1.msra.mxu0 0.0
      %334 = vmatprep.subr.mxu0 0.0
      %335 = vmatpush1.msra.mxu0 0.0
      %336 = vmatprep.subr.mxu0 0.0
      %337 = vmatpush1.msra.mxu0 0.0
      %338 = vmatprep.subr.mxu0 0.0
      %339 = vmatpush1.msra.mxu0 %v209
      %340 = vmatprep.subr.mxu0 0.0
      %341 = vmatpush1.msra.mxu0 %v208
      %342 = vmatprep.subr.mxu0 0.0
      %343 = vmatpush1.msra.mxu0 %v207
      %344 = vmatprep.subr.mxu0 0.0
      %345 = vmatpush1.msra.mxu0 %v206
      %346 = vmatprep.subr.mxu0 0.0
      %347 = vmatpush2.msra.mxu0 0.0
      %348 = vmatprep.subr.mxu0 0.0
      %349 = vmatpush2.msra.mxu0 0.0
      %350 = vmatprep.subr.mxu0 0.0
      %351 = vmatpush2.msra.mxu0 0.0
      %352 = vmatprep.subr.mxu0 0.0
      %353 = vmatpush2.msra.mxu0 0.0
      %354 = vmatprep.subr.mxu0 0.0
      %355 = vmatpush2.msra.mxu0 0.0
      %356 = vmatprep.subr.mxu0 0.0
      %357 = vmatpush2.msra.mxu0 0.0
      %358 = vmatprep.subr.mxu0 0.0
      %359 = vmatpush2.msra.mxu0 0.0
      %360 = vmatprep.subr.mxu0 0.0
      %361 = vmatpush2.msra.mxu0 0.0
      %362 = vmatprep.subr.mxu0 0.0
      %363 = vmatpush2.msra.mxu0 0.0
      %364 = vmatprep.subr.mxu0 0.0
      %365 = vmatpush2.msra.mxu0 0.0
      %366 = vmatprep.subr.mxu0 0.0
      %367 = vmatpush2.msra.mxu0 0.0
      %368 = vmatprep.subr.mxu0 0.0
      %369 = vmatpush2.msra.mxu0 0.0
      %370 = vmatprep.subr.mxu0 0.0
      %371 = vmatpush2.msra.mxu0 0.0
      %372 = vmatprep.subr.mxu0 0.0
      %373 = vmatpush2.msra.mxu0 0.0
      %374 = vmatprep.subr.mxu0 0.0
      %375 = vmatpush2.msra.mxu0 0.0
      %376 = vmatprep.subr.mxu0 0.0
      %377 = vmatpush2.msra.mxu0 0.0
      %378 = vmatprep.mubr.f32.mxu0 0.0
      %379 = vmatmul.mubr.f32.gmra.mxu0 %v219
      %v380 = vpop.f32.mrf.mxu0
      %v381 = vadd.f32 %v215, %v380
      %v382 = vpop.f32.mrf.mxu0
      %383 = vmatprep.mubr.f32.mxu0 0.0
      %384 = vmatmul.mubr.f32.gmra.mxu0 %v222
      %v385 = vpop.f32.mrf.mxu0
      %v386 = vadd.f32 %v215, %v385
      %v387 = vpop.f32.mrf.mxu0
      %388 = vmatprep.mubr.f32.mxu0 0.0
      %389 = vmatmul.mubr.f32.gmra.mxu0 %v225
      %v390 = vpop.f32.mrf.mxu0
      %v391 = vadd.f32 %v215, %v390
      %v392 = vpop.f32.mrf.mxu0
      %393 = vmatprep.mubr.f32.mxu0 0.0
      %394 = vmatmul.mubr.f32.gmra.mxu0 %v228
      %v395 = vpop.f32.mrf.mxu0
      %v396 = vadd.f32 %v215, %v395
      %v397 = vpop.f32.mrf.mxu0
      %398 = vmatprep.mubr.f32.mxu0 0.0
      %399 = vmatmul.mubr.f32.gmra.mxu0 %v231
      %v400 = vpop.f32.mrf.mxu0
      %v401 = vadd.f32 %v215, %v400
      %v402 = vpop.f32.mrf.mxu0
      %403 = vmatprep.mubr.f32.mxu0 0.0
      %404 = vmatmul.mubr.f32.gmra.mxu0 %v234
      %v405 = vpop.f32.mrf.mxu0
      %v406 = vadd.f32 %v215, %v405
      %v407 = vpop.f32.mrf.mxu0
      %408 = vmatprep.mubr.f32.mxu0 0.0
      %409 = vmatmul.mubr.f32.gmra.mxu0 %v237
      %v410 = vpop.f32.mrf.mxu0
      %v411 = vadd.f32 %v215, %v410
      %v412 = vpop.f32.mrf.mxu0
      %413 = vmatprep.mubr.f32.mxu0 0.0
      %414 = vmatmul.mubr.f32.gmra.mxu0 %v240
      %v415 = vpop.f32.mrf.mxu0
      %v416 = vadd.f32 %v215, %v415
      %v417 = vpop.f32.mrf.mxu0
      %418 = vmatprep.mubr.f32.mxu0 0.0
      %419 = vmatmul.mubr.f32.gmra.mxu0 %v243
      %v420 = vpop.f32.mrf.mxu0
      %v421 = vadd.f32 %v215, %v420
      %v422 = vpop.f32.mrf.mxu0
      %423 = vmatprep.mubr.f32.mxu0 0.0
      %424 = vmatmul.mubr.f32.gmra.mxu0 %v246
      %v425 = vpop.f32.mrf.mxu0
      %v426 = vadd.f32 %v215, %v425
      %v427 = vpop.f32.mrf.mxu0
      %428 = vmatprep.mubr.f32.mxu0 0.0
      %429 = vmatmul.mubr.f32.gmra.mxu0 %v249
      %v430 = vpop.f32.mrf.mxu0
      %v431 = vadd.f32 %v215, %v430
      %v432 = vpop.f32.mrf.mxu0
      %433 = vmatprep.mubr.f32.mxu0 0.0
      %434 = vmatmul.mubr.f32.gmra.mxu0 %v252
      %v435 = vpop.f32.mrf.mxu0
      %v436 = vadd.f32 %v215, %v435
      %v437 = vpop.f32.mrf.mxu0
      %438 = vmatprep.mubr.f32.mxu0 0.0
      %439 = vmatmul.mubr.f32.gmra.mxu0 %v255
      %v440 = vpop.f32.mrf.mxu0
      %v441 = vadd.f32 %v215, %v440
      %v442 = vpop.f32.mrf.mxu0
      %443 = vmatprep.mubr.f32.mxu0 0.0
      %444 = vmatmul.mubr.f32.gmra.mxu0 %v258
      %v445 = vpop.f32.mrf.mxu0
      %v446 = vadd.f32 %v215, %v445
      %v447 = vpop.f32.mrf.mxu0
      %448 = vmatprep.mubr.f32.mxu0 0.0
      %449 = vmatmul.mubr.f32.gmra.mxu0 %v261
      %v450 = vpop.f32.mrf.mxu0
      %v451 = vadd.f32 %v215, %v450
      %v452 = vpop.f32.mrf.mxu0
      %453 = vmatprep.mubr.f32.mxu0 0.0
      %454 = vmatmul.mubr.f32.gmra.mxu0 %v264
      %v455 = vpop.f32.mrf.mxu0
      %v456 = vadd.f32 %v215, %v455
      %v457 = vpop.f32.mrf.mxu0
      %458 = vmatprep.mubr.f32.mxu0 0.0
      %459 = vmatmul.mubr.f32.gmra.mxu0 %v267
      %v460 = vpop.f32.mrf.mxu0
      %v461 = vadd.f32 %v215, %v460
      %v462 = vpop.f32.mrf.mxu0
      %463 = vmatprep.mubr.f32.mxu0 0.0
      %464 = vmatmul.mubr.f32.gmra.mxu0 %v270
      %v465 = vpop.f32.mrf.mxu0
      %v466 = vadd.f32 %v215, %v465
      %v467 = vpop.f32.mrf.mxu0
      %468 = vmatprep.mubr.f32.mxu0 0.0
      %469 = vmatmul.mubr.f32.gmra.mxu0 %v273
      %v470 = vpop.f32.mrf.mxu0
      %v471 = vadd.f32 %v215, %v470
      %v472 = vpop.f32.mrf.mxu0
      %473 = vmatprep.mubr.f32.mxu0 0.0
      %474 = vmatmul.mubr.f32.gmra.mxu0 %v276
      %v475 = vpop.f32.mrf.mxu0
      %v476 = vadd.f32 %v215, %v475
      %v477 = vpop.f32.mrf.mxu0
      %478 = vmatprep.mubr.f32.mxu0 0.0
      %479 = vmatmul.mubr.f32.gmra.mxu0 %v279
      %v480 = vpop.f32.mrf.mxu0
      %v481 = vadd.f32 %v215, %v480
      %v482 = vpop.f32.mrf.mxu0
      %483 = vmatprep.mubr.f32.mxu0 0.0
      %484 = vmatmul.mubr.f32.gmra.mxu0 %v282
      %v485 = vpop.f32.mrf.mxu0
      %v486 = vadd.f32 %v215, %v485
      %v487 = vpop.f32.mrf.mxu0
      %488 = vmatprep.mubr.f32.mxu0 0.0
      %489 = vmatmul.mubr.f32.gmra.mxu0 %v285
      %v490 = vpop.f32.mrf.mxu0
      %v491 = vadd.f32 %v215, %v490
      %v492 = vpop.f32.mrf.mxu0
      %493 = vmatprep.mubr.f32.mxu0 0.0
      %494 = vmatmul.mubr.f32.gmra.mxu0 %v288
      %v495 = vpop.f32.mrf.mxu0
      %v496 = vadd.f32 %v215, %v495
      %v497 = vpop.f32.mrf.mxu0
      %498 = vmatprep.mubr.f32.mxu0 0.0
      %499 = vmatmul.mubr.f32.gmra.mxu0 %v291
      %v500 = vpop.f32.mrf.mxu0
      %v501 = vadd.f32 %v215, %v500
      %v502 = vpop.f32.mrf.mxu0
      %503 = vmatprep.mubr.f32.mxu0 0.0
      %504 = vmatmul.mubr.f32.gmra.mxu0 %v294
      %v505 = vpop.f32.mrf.mxu0
      %v506 = vadd.f32 %v215, %v505
      %v507 = vpop.f32.mrf.mxu0
      %508 = vmatprep.mubr.f32.mxu0 0.0
      %509 = vmatmul.mubr.f32.gmra.mxu0 %v297
      %v510 = vpop.f32.mrf.mxu0
      %v511 = vadd.f32 %v215, %v510
      %v512 = vpop.f32.mrf.mxu0
      %513 = vmatprep.mubr.f32.mxu0 0.0
      %514 = vmatmul.mubr.f32.gmra.mxu0 %v300
      %v515 = vpop.f32.mrf.mxu0
      %v516 = vadd.f32 %v215, %v515
      %v517 = vpop.f32.mrf.mxu0
      %518 = vmatprep.mubr.f32.mxu0 0.0
      %519 = vmatmul.mubr.f32.gmra.mxu0 %v303
      %v520 = vpop.f32.mrf.mxu0
      %v521 = vadd.f32 %v215, %v520
      %v522 = vpop.f32.mrf.mxu0
      %523 = vmatprep.mubr.f32.mxu0 0.0
      %524 = vmatmul.mubr.f32.gmra.mxu0 %v306
      %v525 = vpop.f32.mrf.mxu0
      %v526 = vadd.f32 %v215, %v525
      %v527 = vpop.f32.mrf.mxu0
      %528 = vmatprep.mubr.f32.mxu0 0.0
      %529 = vmatmul.mubr.f32.gmra.mxu0 %v309
      %v530 = vpop.f32.mrf.mxu0
      %v531 = vadd.f32 %v215, %v530
      %v532 = vpop.f32.mrf.mxu0
      %533 = vmatprep.mubr.f32.mxu0 0.0
      %534 = vmatmul.mubr.f32.gmra.mxu0 %v312
      %v535 = vpop.f32.mrf.mxu0
      %v536 = vadd.f32 %v215, %v535
      %v537 = vpop.f32.mrf.mxu0
      %538 = vdwg.mxu0
      %v539 = vmax.f32 %v381, 0.0
      %v540 = vmax.f32 %v386, 0.0
      %v541 = vmax.f32 %v391, 0.0
      %v542 = vmax.f32 %v396, 0.0
      %v543 = vmax.f32 %v401, 0.0
      %v544 = vmax.f32 %v406, 0.0
      %v545 = vmax.f32 %v411, 0.0
      %v546 = vmax.f32 %v416, 0.0
      %v547 = vmax.f32 %v421, 0.0
      %v548 = vmax.f32 %v426, 0.0
      %v549 = vmax.f32 %v431, 0.0
      %v550 = vmax.f32 %v436, 0.0
      %v551 = vmax.f32 %v441, 0.0
      %v552 = vmax.f32 %v446, 0.0
      %v553 = vmax.f32 %v451, 0.0
      %v554 = vmax.f32 %v456, 0.0
      %v555 = vmax.f32 %v461, 0.0
      %v556 = vmax.f32 %v466, 0.0
      %v557 = vmax.f32 %v471, 0.0
      %v558 = vmax.f32 %v476, 0.0
      %v559 = vmax.f32 %v481, 0.0
      %v560 = vmax.f32 %v486, 0.0
      %v561 = vmax.f32 %v491, 0.0
      %v562 = vmax.f32 %v496, 0.0
      %v563 = vmax.f32 %v501, 0.0
      %v564 = vmax.f32 %v506, 0.0
      %v565 = vmax.f32 %v511, 0.0
      %v566 = vmax.f32 %v516, 0.0
      %v567 = vmax.f32 %v521, 0.0
      %v568 = vmax.f32 %v526, 0.0
      %v569 = vmax.f32 %v531, 0.0
      %v570 = vmax.f32 %v536, 0.0
      %s571 = scalar_lea.vmem %s1, 128
      %v572 = vld [vmem:[%s571] sm:$0xff]
      %v573 = vld [vmem:[%s571 + $0x8] sm:$0xff]
      %v574 = vld [vmem:[%s571 + $0x10] sm:$0xff]
      %v575 = vld [vmem:[%s571 + $0x18] sm:$0xff]
      %v576 = vld [vmem:[%s571 + $0x20] sm:$0xff]
      %v577 = vld [vmem:[%s571 + $0x28] sm:$0xff]
      %v578 = vld [vmem:[%s571 + $0x30] sm:$0xff]
      %v579 = vld [vmem:[%s571 + $0x38] sm:$0xff]
      %v580 = vld [vmem:[%s571 + $0x40] sm:$0xff]
      %v581 = vld [vmem:[%s571 + $0x48] sm:$0xff]
      %v582 = vld [vmem:[%s571 + $0x50] sm:$0xff]
      %v583 = vld [vmem:[%s571 + $0x58] sm:$0xff]
      %v584 = vld [vmem:[%s571 + $0x60] sm:$0xff]
      %v585 = vld [vmem:[%s571 + $0x68] sm:$0xff]
      %v586 = vld [vmem:[%s571 + $0x70] sm:$0xff]
      %v587 = vld [vmem:[%s571 + $0x78] sm:$0xff]
      %s588 = scalar_lea.vmem %s2, 1
      %v589 = vld [vmem:[%s588] sm:$0x1]
      %v591 = vlaneseq
      %v592 = vshrl.u32 %v591, 7
      %v593 = vsub.s32 0, %v592
      %v594 = vrot.slane %v589, %v593
      %596 = vmatprep.subr.mxu0 0.0
      %597 = vmatpush1.msra.mxu0 %v587
      %598 = vmatprep.subr.mxu0 0.0
      %599 = vmatpush1.msra.mxu0 %v586
      %600 = vmatprep.subr.mxu0 0.0
      %601 = vmatpush1.msra.mxu0 %v585
      %602 = vmatprep.subr.mxu0 0.0
      %603 = vmatpush1.msra.mxu0 %v584
      %604 = vmatprep.subr.mxu0 0.0
      %605 = vmatpush1.msra.mxu0 %v583
      %606 = vmatprep.subr.mxu0 0.0
      %607 = vmatpush1.msra.mxu0 %v582
      %608 = vmatprep.subr.mxu0 0.0
      %609 = vmatpush1.msra.mxu0 %v581
      %610 = vmatprep.subr.mxu0 0.0
      %611 = vmatpush1.msra.mxu0 %v580
      %612 = vmatprep.subr.mxu0 0.0
      %613 = vmatpush1.msra.mxu0 %v579
      %614 = vmatprep.subr.mxu0 0.0
      %615 = vmatpush1.msra.mxu0 %v578
      %616 = vmatprep.subr.mxu0 0.0
      %617 = vmatpush1.msra.mxu0 %v577
      %618 = vmatprep.subr.mxu0 0.0
      %619 = vmatpush1.msra.mxu0 %v576
      %620 = vmatprep.subr.mxu0 0.0
      %621 = vmatpush1.msra.mxu0 %v575
      %622 = vmatprep.subr.mxu0 0.0
      %623 = vmatpush1.msra.mxu0 %v574
      %624 = vmatprep.subr.mxu0 0.0
      %625 = vmatpush1.msra.mxu0 %v573
      %626 = vmatprep.subr.mxu0 0.0
      %627 = vmatpush1.msra.mxu0 %v572
      %628 = vmatprep.subr.mxu0 0.0
      %629 = vmatpush2.msra.mxu0 0.0
      %630 = vmatprep.subr.mxu0 0.0
      %631 = vmatpush2.msra.mxu0 0.0
      %632 = vmatprep.subr.mxu0 0.0
      %633 = vmatpush2.msra.mxu0 0.0
      %634 = vmatprep.subr.mxu0 0.0
      %635 = vmatpush2.msra.mxu0 0.0
      %636 = vmatprep.subr.mxu0 0.0
      %637 = vmatpush2.msra.mxu0 0.0
      %638 = vmatprep.subr.mxu0 0.0
      %639 = vmatpush2.msra.mxu0 0.0
      %640 = vmatprep.subr.mxu0 0.0
      %641 = vmatpush2.msra.mxu0 0.0
      %642 = vmatprep.subr.mxu0 0.0
      %643 = vmatpush2.msra.mxu0 0.0
      %644 = vmatprep.subr.mxu0 0.0
      %645 = vmatpush2.msra.mxu0 0.0
      %646 = vmatprep.subr.mxu0 0.0
      %647 = vmatpush2.msra.mxu0 0.0
      %648 = vmatprep.subr.mxu0 0.0
      %649 = vmatpush2.msra.mxu0 0.0
      %650 = vmatprep.subr.mxu0 0.0
      %651 = vmatpush2.msra.mxu0 0.0
      %652 = vmatprep.subr.mxu0 0.0
      %653 = vmatpush2.msra.mxu0 0.0
      %654 = vmatprep.subr.mxu0 0.0
      %655 = vmatpush2.msra.mxu0 0.0
      %656 = vmatprep.subr.mxu0 0.0
      %657 = vmatpush2.msra.mxu0 0.0
      %658 = vmatprep.subr.mxu0 0.0
      %659 = vmatpush2.msra.mxu0 0.0
      %660 = vmatprep.mubr.f32.mxu0 0.0
      %661 = vmatmul.mubr.f32.gmra.mxu0 %v539
      %v662 = vpop.f32.mrf.mxu0
      %v663 = vadd.f32 %v594, %v662
      %v664 = vpop.f32.mrf.mxu0
      %665 = vmatprep.mubr.f32.mxu0 0.0
      %666 = vmatmul.mubr.f32.gmra.mxu0 %v540
      %v667 = vpop.f32.mrf.mxu0
      %v668 = vadd.f32 %v594, %v667
      %v669 = vpop.f32.mrf.mxu0
      %670 = vmatprep.mubr.f32.mxu0 0.0
      %671 = vmatmul.mubr.f32.gmra.mxu0 %v541
      %v672 = vpop.f32.mrf.mxu0
      %v673 = vadd.f32 %v594, %v672
      %v674 = vpop.f32.mrf.mxu0
      %675 = vmatprep.mubr.f32.mxu0 0.0
      %676 = vmatmul.mubr.f32.gmra.mxu0 %v542
      %v677 = vpop.f32.mrf.mxu0
      %v678 = vadd.f32 %v594, %v677
      %v679 = vpop.f32.mrf.mxu0
      %680 = vmatprep.mubr.f32.mxu0 0.0
      %681 = vmatmul.mubr.f32.gmra.mxu0 %v543
      %v682 = vpop.f32.mrf.mxu0
      %v683 = vadd.f32 %v594, %v682
      %v684 = vpop.f32.mrf.mxu0
      %685 = vmatprep.mubr.f32.mxu0 0.0
      %686 = vmatmul.mubr.f32.gmra.mxu0 %v544
      %v687 = vpop.f32.mrf.mxu0
      %v688 = vadd.f32 %v594, %v687
      %v689 = vpop.f32.mrf.mxu0
      %690 = vmatprep.mubr.f32.mxu0 0.0
      %691 = vmatmul.mubr.f32.gmra.mxu0 %v545
      %v692 = vpop.f32.mrf.mxu0
      %v693 = vadd.f32 %v594, %v692
      %v694 = vpop.f32.mrf.mxu0
      %695 = vmatprep.mubr.f32.mxu0 0.0
      %696 = vmatmul.mubr.f32.gmra.mxu0 %v546
      %v697 = vpop.f32.mrf.mxu0
      %v698 = vadd.f32 %v594, %v697
      %v699 = vpop.f32.mrf.mxu0
      %700 = vmatprep.mubr.f32.mxu0 0.0
      %701 = vmatmul.mubr.f32.gmra.mxu0 %v547
      %v702 = vpop.f32.mrf.mxu0
      %v703 = vadd.f32 %v594, %v702
      %v704 = vpop.f32.mrf.mxu0
      %705 = vmatprep.mubr.f32.mxu0 0.0
      %706 = vmatmul.mubr.f32.gmra.mxu0 %v548
      %v707 = vpop.f32.mrf.mxu0
      %v708 = vadd.f32 %v594, %v707
      %v709 = vpop.f32.mrf.mxu0
      %710 = vmatprep.mubr.f32.mxu0 0.0
      %711 = vmatmul.mubr.f32.gmra.mxu0 %v549
      %v712 = vpop.f32.mrf.mxu0
      %v713 = vadd.f32 %v594, %v712
      %v714 = vpop.f32.mrf.mxu0
      %715 = vmatprep.mubr.f32.mxu0 0.0
      %716 = vmatmul.mubr.f32.gmra.mxu0 %v550
      %v717 = vpop.f32.mrf.mxu0
      %v718 = vadd.f32 %v594, %v717
      %v719 = vpop.f32.mrf.mxu0
      %720 = vmatprep.mubr.f32.mxu0 0.0
      %721 = vmatmul.mubr.f32.gmra.mxu0 %v551
      %v722 = vpop.f32.mrf.mxu0
      %v723 = vadd.f32 %v594, %v722
      %v724 = vpop.f32.mrf.mxu0
      %725 = vmatprep.mubr.f32.mxu0 0.0
      %726 = vmatmul.mubr.f32.gmra.mxu0 %v552
      %v727 = vpop.f32.mrf.mxu0
      %v728 = vadd.f32 %v594, %v727
      %v729 = vpop.f32.mrf.mxu0
      %730 = vmatprep.mubr.f32.mxu0 0.0
      %731 = vmatmul.mubr.f32.gmra.mxu0 %v553
      %v732 = vpop.f32.mrf.mxu0
      %v733 = vadd.f32 %v594, %v732
      %v734 = vpop.f32.mrf.mxu0
      %735 = vmatprep.mubr.f32.mxu0 0.0
      %736 = vmatmul.mubr.f32.gmra.mxu0 %v554
      %v737 = vpop.f32.mrf.mxu0
      %v738 = vadd.f32 %v594, %v737
      %v739 = vpop.f32.mrf.mxu0
      %740 = vmatprep.mubr.f32.mxu0 0.0
      %741 = vmatmul.mubr.f32.gmra.mxu0 %v555
      %v742 = vpop.f32.mrf.mxu0
      %v743 = vadd.f32 %v594, %v742
      %v744 = vpop.f32.mrf.mxu0
      %745 = vmatprep.mubr.f32.mxu0 0.0
      %746 = vmatmul.mubr.f32.gmra.mxu0 %v556
      %v747 = vpop.f32.mrf.mxu0
      %v748 = vadd.f32 %v594, %v747
      %v749 = vpop.f32.mrf.mxu0
      %750 = vmatprep.mubr.f32.mxu0 0.0
      %751 = vmatmul.mubr.f32.gmra.mxu0 %v557
      %v752 = vpop.f32.mrf.mxu0
      %v753 = vadd.f32 %v594, %v752
      %v754 = vpop.f32.mrf.mxu0
      %755 = vmatprep.mubr.f32.mxu0 0.0
      %756 = vmatmul.mubr.f32.gmra.mxu0 %v558
      %v757 = vpop.f32.mrf.mxu0
      %v758 = vadd.f32 %v594, %v757
      %v759 = vpop.f32.mrf.mxu0
      %760 = vmatprep.mubr.f32.mxu0 0.0
      %761 = vmatmul.mubr.f32.gmra.mxu0 %v559
      %v762 = vpop.f32.mrf.mxu0
      %v763 = vadd.f32 %v594, %v762
      %v764 = vpop.f32.mrf.mxu0
      %765 = vmatprep.mubr.f32.mxu0 0.0
      %766 = vmatmul.mubr.f32.gmra.mxu0 %v560
      %v767 = vpop.f32.mrf.mxu0
      %v768 = vadd.f32 %v594, %v767
      %v769 = vpop.f32.mrf.mxu0
      %770 = vmatprep.mubr.f32.mxu0 0.0
      %771 = vmatmul.mubr.f32.gmra.mxu0 %v561
      %v772 = vpop.f32.mrf.mxu0
      %v773 = vadd.f32 %v594, %v772
      %v774 = vpop.f32.mrf.mxu0
      %775 = vmatprep.mubr.f32.mxu0 0.0
      %776 = vmatmul.mubr.f32.gmra.mxu0 %v562
      %v777 = vpop.f32.mrf.mxu0
      %v778 = vadd.f32 %v594, %v777
      %v779 = vpop.f32.mrf.mxu0
      %780 = vmatprep.mubr.f32.mxu0 0.0
      %781 = vmatmul.mubr.f32.gmra.mxu0 %v563
      %v782 = vpop.f32.mrf.mxu0
      %v783 = vadd.f32 %v594, %v782
      %v784 = vpop.f32.mrf.mxu0
      %785 = vmatprep.mubr.f32.mxu0 0.0
      %786 = vmatmul.mubr.f32.gmra.mxu0 %v564
      %v787 = vpop.f32.mrf.mxu0
      %v788 = vadd.f32 %v594, %v787
      %v789 = vpop.f32.mrf.mxu0
      %790 = vmatprep.mubr.f32.mxu0 0.0
      %791 = vmatmul.mubr.f32.gmra.mxu0 %v565
      %v792 = vpop.f32.mrf.mxu0
      %v793 = vadd.f32 %v594, %v792
      %v794 = vpop.f32.mrf.mxu0
      %795 = vmatprep.mubr.f32.mxu0 0.0
      %796 = vmatmul.mubr.f32.gmra.mxu0 %v566
      %v797 = vpop.f32.mrf.mxu0
      %v798 = vadd.f32 %v594, %v797
      %v799 = vpop.f32.mrf.mxu0
      %800 = vmatprep.mubr.f32.mxu0 0.0
      %801 = vmatmul.mubr.f32.gmra.mxu0 %v567
      %v802 = vpop.f32.mrf.mxu0
      %v803 = vadd.f32 %v594, %v802
      %v804 = vpop.f32.mrf.mxu0
      %805 = vmatprep.mubr.f32.mxu0 0.0
      %806 = vmatmul.mubr.f32.gmra.mxu0 %v568
      %v807 = vpop.f32.mrf.mxu0
      %v808 = vadd.f32 %v594, %v807
      %v809 = vpop.f32.mrf.mxu0
      %810 = vmatprep.mubr.f32.mxu0 0.0
      %811 = vmatmul.mubr.f32.gmra.mxu0 %v569
      %v812 = vpop.f32.mrf.mxu0
      %v813 = vadd.f32 %v594, %v812
      %v814 = vpop.f32.mrf.mxu0
      %815 = vmatprep.mubr.f32.mxu0 0.0
      %816 = vmatmul.mubr.f32.gmra.mxu0 %v570
      %v817 = vpop.f32.mrf.mxu0
      %v818 = vadd.f32 %v594, %v817
      %v819 = vpop.f32.mrf.mxu0
      %820 = vdwg.mxu0
      %v821 = vmax.f32 %v663, 0.0
      %v822 = vmax.f32 %v668, 0.0
      %v823 = vmax.f32 %v673, 0.0
      %v824 = vmax.f32 %v678, 0.0
      %v825 = vmax.f32 %v683, 0.0
      %v826 = vmax.f32 %v688, 0.0
      %v827 = vmax.f32 %v693, 0.0
      %v828 = vmax.f32 %v698, 0.0
      %v829 = vmax.f32 %v703, 0.0
      %v830 = vmax.f32 %v708, 0.0
      %v831 = vmax.f32 %v713, 0.0
      %v832 = vmax.f32 %v718, 0.0
      %v833 = vmax.f32 %v723, 0.0
      %v834 = vmax.f32 %v728, 0.0
      %v835 = vmax.f32 %v733, 0.0
      %v836 = vmax.f32 %v738, 0.0
      %v837 = vmax.f32 %v743, 0.0
      %v838 = vmax.f32 %v748, 0.0
      %v839 = vmax.f32 %v753, 0.0
      %v840 = vmax.f32 %v758, 0.0
      %v841 = vmax.f32 %v763, 0.0
      %v842 = vmax.f32 %v768, 0.0
      %v843 = vmax.f32 %v773, 0.0
      %v844 = vmax.f32 %v778, 0.0
      %v845 = vmax.f32 %v783, 0.0
      %v846 = vmax.f32 %v788, 0.0
      %v847 = vmax.f32 %v793, 0.0
      %v848 = vmax.f32 %v798, 0.0
      %v849 = vmax.f32 %v803, 0.0
      %v850 = vmax.f32 %v808, 0.0
      %v851 = vmax.f32 %v813, 0.0
      %v852 = vmax.f32 %v818, 0.0
      %s853 = scalar_lea.vmem %s1, 256
      %v854 = vld [vmem:[%s853] sm:$0xff]
      %v855 = vld [vmem:[%s853 + $0x8] sm:$0xff]
      %v856 = vld [vmem:[%s853 + $0x10] sm:$0xff]
      %v857 = vld [vmem:[%s853 + $0x18] sm:$0xff]
      %v858 = vld [vmem:[%s853 + $0x20] sm:$0xff]
      %v859 = vld [vmem:[%s853 + $0x28] sm:$0xff]
      %v860 = vld [vmem:[%s853 + $0x30] sm:$0xff]
      %v861 = vld [vmem:[%s853 + $0x38] sm:$0xff]
      %v862 = vld [vmem:[%s853 + $0x40] sm:$0xff]
      %v863 = vld [vmem:[%s853 + $0x48] sm:$0xff]
      %v864 = vld [vmem:[%s853 + $0x50] sm:$0xff]
      %v865 = vld [vmem:[%s853 + $0x58] sm:$0xff]
      %v866 = vld [vmem:[%s853 + $0x60] sm:$0xff]
      %v867 = vld [vmem:[%s853 + $0x68] sm:$0xff]
      %v868 = vld [vmem:[%s853 + $0x70] sm:$0xff]
      %v869 = vld [vmem:[%s853 + $0x78] sm:$0xff]
      %s870 = scalar_lea.vmem %s2, 2
      %v871 = vld [vmem:[%s870] sm:$0x1]
      %v873 = vlaneseq
      %v874 = vshrl.u32 %v873, 7
      %v875 = vsub.s32 0, %v874
      %v876 = vrot.slane %v871, %v875
      %878 = vmatprep.subr.mxu0 0.0
      %879 = vmatpush1.msra.mxu0 %v869
      %880 = vmatprep.subr.mxu0 0.0
      %881 = vmatpush1.msra.mxu0 %v868
      %882 = vmatprep.subr.mxu0 0.0
      %883 = vmatpush1.msra.mxu0 %v867
      %884 = vmatprep.subr.mxu0 0.0
      %885 = vmatpush1.msra.mxu0 %v866
      %886 = vmatprep.subr.mxu0 0.0
      %887 = vmatpush1.msra.mxu0 %v865
      %888 = vmatprep.subr.mxu0 0.0
      %889 = vmatpush1.msra.mxu0 %v864
      %890 = vmatprep.subr.mxu0 0.0
      %891 = vmatpush1.msra.mxu0 %v863
      %892 = vmatprep.subr.mxu0 0.0
      %893 = vmatpush1.msra.mxu0 %v862
      %894 = vmatprep.subr.mxu0 0.0
      %895 = vmatpush1.msra.mxu0 %v861
      %896 = vmatprep.subr.mxu0 0.0
      %897 = vmatpush1.msra.mxu0 %v860
      %898 = vmatprep.subr.mxu0 0.0
      %899 = vmatpush1.msra.mxu0 %v859
      %900 = vmatprep.subr.mxu0 0.0
      %901 = vmatpush1.msra.mxu0 %v858
      %902 = vmatprep.subr.mxu0 0.0
      %903 = vmatpush1.msra.mxu0 %v857
      %904 = vmatprep.subr.mxu0 0.0
      %905 = vmatpush1.msra.mxu0 %v856
      %906 = vmatprep.subr.mxu0 0.0
      %907 = vmatpush1.msra.mxu0 %v855
      %908 = vmatprep.subr.mxu0 0.0
      %909 = vmatpush1.msra.mxu0 %v854
      %910 = vmatprep.subr.mxu0 0.0
      %911 = vmatpush2.msra.mxu0 0.0
      %912 = vmatprep.subr.mxu0 0.0
      %913 = vmatpush2.msra.mxu0 0.0
      %914 = vmatprep.subr.mxu0 0.0
      %915 = vmatpush2.msra.mxu0 0.0
      %916 = vmatprep.subr.mxu0 0.0
      %917 = vmatpush2.msra.mxu0 0.0
      %918 = vmatprep.subr.mxu0 0.0
      %919 = vmatpush2.msra.mxu0 0.0
      %920 = vmatprep.subr.mxu0 0.0
      %921 = vmatpush2.msra.mxu0 0.0
      %922 = vmatprep.subr.mxu0 0.0
      %923 = vmatpush2.msra.mxu0 0.0
      %924 = vmatprep.subr.mxu0 0.0
      %925 = vmatpush2.msra.mxu0 0.0
      %926 = vmatprep.subr.mxu0 0.0
      %927 = vmatpush2.msra.mxu0 0.0
      %928 = vmatprep.subr.mxu0 0.0
      %929 = vmatpush2.msra.mxu0 0.0
      %930 = vmatprep.subr.mxu0 0.0
      %931 = vmatpush2.msra.mxu0 0.0
      %932 = vmatprep.subr.mxu0 0.0
      %933 = vmatpush2.msra.mxu0 0.0
      %934 = vmatprep.subr.mxu0 0.0
      %935 = vmatpush2.msra.mxu0 0.0
      %936 = vmatprep.subr.mxu0 0.0
      %937 = vmatpush2.msra.mxu0 0.0
      %938 = vmatprep.subr.mxu0 0.0
      %939 = vmatpush2.msra.mxu0 0.0
      %940 = vmatprep.subr.mxu0 0.0
      %941 = vmatpush2.msra.mxu0 0.0
      %942 = vmatprep.mubr.f32.mxu0 0.0
      %943 = vmatmul.mubr.f32.gmra.mxu0 %v821
      %v944 = vpop.f32.mrf.mxu0
      %v945 = vadd.f32 %v876, %v944
      %v946 = vpop.f32.mrf.mxu0
      %947 = vmatprep.mubr.f32.mxu0 0.0
      %948 = vmatmul.mubr.f32.gmra.mxu0 %v822
      %v949 = vpop.f32.mrf.mxu0
      %v950 = vadd.f32 %v876, %v949
      %v951 = vpop.f32.mrf.mxu0
      %952 = vmatprep.mubr.f32.mxu0 0.0
      %953 = vmatmul.mubr.f32.gmra.mxu0 %v823
      %v954 = vpop.f32.mrf.mxu0
      %v955 = vadd.f32 %v876, %v954
      %v956 = vpop.f32.mrf.mxu0
      %957 = vmatprep.mubr.f32.mxu0 0.0
      %958 = vmatmul.mubr.f32.gmra.mxu0 %v824
      %v959 = vpop.f32.mrf.mxu0
      %v960 = vadd.f32 %v876, %v959
      %v961 = vpop.f32.mrf.mxu0
      %962 = vmatprep.mubr.f32.mxu0 0.0
      %963 = vmatmul.mubr.f32.gmra.mxu0 %v825
      %v964 = vpop.f32.mrf.mxu0
      %v965 = vadd.f32 %v876, %v964
      %v966 = vpop.f32.mrf.mxu0
      %967 = vmatprep.mubr.f32.mxu0 0.0
      %968 = vmatmul.mubr.f32.gmra.mxu0 %v826
      %v969 = vpop.f32.mrf.mxu0
      %v970 = vadd.f32 %v876, %v969
      %v971 = vpop.f32.mrf.mxu0
      %972 = vmatprep.mubr.f32.mxu0 0.0
      %973 = vmatmul.mubr.f32.gmra.mxu0 %v827
      %v974 = vpop.f32.mrf.mxu0
      %v975 = vadd.f32 %v876, %v974
      %v976 = vpop.f32.mrf.mxu0
      %977 = vmatprep.mubr.f32.mxu0 0.0
      %978 = vmatmul.mubr.f32.gmra.mxu0 %v828
      %v979 = vpop.f32.mrf.mxu0
      %v980 = vadd.f32 %v876, %v979
      %v981 = vpop.f32.mrf.mxu0
      %982 = vmatprep.mubr.f32.mxu0 0.0
      %983 = vmatmul.mubr.f32.gmra.mxu0 %v829
      %v984 = vpop.f32.mrf.mxu0
      %v985 = vadd.f32 %v876, %v984
      %v986 = vpop.f32.mrf.mxu0
      %987 = vmatprep.mubr.f32.mxu0 0.0
      %988 = vmatmul.mubr.f32.gmra.mxu0 %v830
      %v989 = vpop.f32.mrf.mxu0
      %v990 = vadd.f32 %v876, %v989
      %v991 = vpop.f32.mrf.mxu0
      %992 = vmatprep.mubr.f32.mxu0 0.0
      %993 = vmatmul.mubr.f32.gmra.mxu0 %v831
      %v994 = vpop.f32.mrf.mxu0
      %v995 = vadd.f32 %v876, %v994
      %v996 = vpop.f32.mrf.mxu0
      %997 = vmatprep.mubr.f32.mxu0 0.0
      %998 = vmatmul.mubr.f32.gmra.mxu0 %v832
      %v999 = vpop.f32.mrf.mxu0
      %v1000 = vadd.f32 %v876, %v999
      %v1001 = vpop.f32.mrf.mxu0
      %1002 = vmatprep.mubr.f32.mxu0 0.0
      %1003 = vmatmul.mubr.f32.gmra.mxu0 %v833
      %v1004 = vpop.f32.mrf.mxu0
      %v1005 = vadd.f32 %v876, %v1004
      %v1006 = vpop.f32.mrf.mxu0
      %1007 = vmatprep.mubr.f32.mxu0 0.0
      %1008 = vmatmul.mubr.f32.gmra.mxu0 %v834
      %v1009 = vpop.f32.mrf.mxu0
      %v1010 = vadd.f32 %v876, %v1009
      %v1011 = vpop.f32.mrf.mxu0
      %1012 = vmatprep.mubr.f32.mxu0 0.0
      %1013 = vmatmul.mubr.f32.gmra.mxu0 %v835
      %v1014 = vpop.f32.mrf.mxu0
      %v1015 = vadd.f32 %v876, %v1014
      %v1016 = vpop.f32.mrf.mxu0
      %1017 = vmatprep.mubr.f32.mxu0 0.0
      %1018 = vmatmul.mubr.f32.gmra.mxu0 %v836
      %v1019 = vpop.f32.mrf.mxu0
      %v1020 = vadd.f32 %v876, %v1019
      %v1021 = vpop.f32.mrf.mxu0
      %1022 = vmatprep.mubr.f32.mxu0 0.0
      %1023 = vmatmul.mubr.f32.gmra.mxu0 %v837
      %v1024 = vpop.f32.mrf.mxu0
      %v1025 = vadd.f32 %v876, %v1024
      %v1026 = vpop.f32.mrf.mxu0
      %1027 = vmatprep.mubr.f32.mxu0 0.0
      %1028 = vmatmul.mubr.f32.gmra.mxu0 %v838
      %v1029 = vpop.f32.mrf.mxu0
      %v1030 = vadd.f32 %v876, %v1029
      %v1031 = vpop.f32.mrf.mxu0
      %1032 = vmatprep.mubr.f32.mxu0 0.0
      %1033 = vmatmul.mubr.f32.gmra.mxu0 %v839
      %v1034 = vpop.f32.mrf.mxu0
      %v1035 = vadd.f32 %v876, %v1034
      %v1036 = vpop.f32.mrf.mxu0
      %1037 = vmatprep.mubr.f32.mxu0 0.0
      %1038 = vmatmul.mubr.f32.gmra.mxu0 %v840
      %v1039 = vpop.f32.mrf.mxu0
      %v1040 = vadd.f32 %v876, %v1039
      %v1041 = vpop.f32.mrf.mxu0
      %1042 = vmatprep.mubr.f32.mxu0 0.0
      %1043 = vmatmul.mubr.f32.gmra.mxu0 %v841
      %v1044 = vpop.f32.mrf.mxu0
      %v1045 = vadd.f32 %v876, %v1044
      %v1046 = vpop.f32.mrf.mxu0
      %1047 = vmatprep.mubr.f32.mxu0 0.0
      %1048 = vmatmul.mubr.f32.gmra.mxu0 %v842
      %v1049 = vpop.f32.mrf.mxu0
      %v1050 = vadd.f32 %v876, %v1049
      %v1051 = vpop.f32.mrf.mxu0
      %1052 = vmatprep.mubr.f32.mxu0 0.0
      %1053 = vmatmul.mubr.f32.gmra.mxu0 %v843
      %v1054 = vpop.f32.mrf.mxu0
      %v1055 = vadd.f32 %v876, %v1054
      %v1056 = vpop.f32.mrf.mxu0
      %1057 = vmatprep.mubr.f32.mxu0 0.0
      %1058 = vmatmul.mubr.f32.gmra.mxu0 %v844
      %v1059 = vpop.f32.mrf.mxu0
      %v1060 = vadd.f32 %v876, %v1059
      %v1061 = vpop.f32.mrf.mxu0
      %1062 = vmatprep.mubr.f32.mxu0 0.0
      %1063 = vmatmul.mubr.f32.gmra.mxu0 %v845
      %v1064 = vpop.f32.mrf.mxu0
      %v1065 = vadd.f32 %v876, %v1064
      %v1066 = vpop.f32.mrf.mxu0
      %1067 = vmatprep.mubr.f32.mxu0 0.0
      %1068 = vmatmul.mubr.f32.gmra.mxu0 %v846
      %v1069 = vpop.f32.mrf.mxu0
      %v1070 = vadd.f32 %v876, %v1069
      %v1071 = vpop.f32.mrf.mxu0
      %1072 = vmatprep.mubr.f32.mxu0 0.0
      %1073 = vmatmul.mubr.f32.gmra.mxu0 %v847
      %v1074 = vpop.f32.mrf.mxu0
      %v1075 = vadd.f32 %v876, %v1074
      %v1076 = vpop.f32.mrf.mxu0
      %1077 = vmatprep.mubr.f32.mxu0 0.0
      %1078 = vmatmul.mubr.f32.gmra.mxu0 %v848
      %v1079 = vpop.f32.mrf.mxu0
      %v1080 = vadd.f32 %v876, %v1079
      %v1081 = vpop.f32.mrf.mxu0
      %1082 = vmatprep.mubr.f32.mxu0 0.0
      %1083 = vmatmul.mubr.f32.gmra.mxu0 %v849
      %v1084 = vpop.f32.mrf.mxu0
      %v1085 = vadd.f32 %v876, %v1084
      %v1086 = vpop.f32.mrf.mxu0
      %1087 = vmatprep.mubr.f32.mxu0 0.0
      %1088 = vmatmul.mubr.f32.gmra.mxu0 %v850
      %v1089 = vpop.f32.mrf.mxu0
      %v1090 = vadd.f32 %v876, %v1089
      %v1091 = vpop.f32.mrf.mxu0
      %1092 = vmatprep.mubr.f32.mxu0 0.0
      %1093 = vmatmul.mubr.f32.gmra.mxu0 %v851
      %v1094 = vpop.f32.mrf.mxu0
      %v1095 = vadd.f32 %v876, %v1094
      %v1096 = vpop.f32.mrf.mxu0
      %1097 = vmatprep.mubr.f32.mxu0 0.0
      %1098 = vmatmul.mubr.f32.gmra.mxu0 %v852
      %v1099 = vpop.f32.mrf.mxu0
      %v1100 = vadd.f32 %v876, %v1099
      %v1101 = vpop.f32.mrf.mxu0
      %1102 = vdwg.mxu0
      %1103 = vst.msk [vmem:[%s172] sm:$0xff] %vm217, %v945
      %1104 = vst.msk [vmem:[%s172 + $0x8] sm:$0xff] %vm217, %v950
      %1105 = vst.msk [vmem:[%s172 + $0x10] sm:$0xff] %vm217, %v955
      %1106 = vst.msk [vmem:[%s172 + $0x18] sm:$0xff] %vm217, %v960
      %1107 = vst.msk [vmem:[%s172 + $0x20] sm:$0xff] %vm217, %v965
      %1108 = vst.msk [vmem:[%s172 + $0x28] sm:$0xff] %vm217, %v970
      %1109 = vst.msk [vmem:[%s172 + $0x30] sm:$0xff] %vm217, %v975
      %1110 = vst.msk [vmem:[%s172 + $0x38] sm:$0xff] %vm217, %v980
      %1111 = vst.msk [vmem:[%s172 + $0x40] sm:$0xff] %vm217, %v985
      %1112 = vst.msk [vmem:[%s172 + $0x48] sm:$0xff] %vm217, %v990
      %1113 = vst.msk [vmem:[%s172 + $0x50] sm:$0xff] %vm217, %v995
      %1114 = vst.msk [vmem:[%s172 + $0x58] sm:$0xff] %vm217, %v1000
      %1115 = vst.msk [vmem:[%s172 + $0x60] sm:$0xff] %vm217, %v1005
      %1116 = vst.msk [vmem:[%s172 + $0x68] sm:$0xff] %vm217, %v1010
      %1117 = vst.msk [vmem:[%s172 + $0x70] sm:$0xff] %vm217, %v1015
      %1118 = vst.msk [vmem:[%s172 + $0x78] sm:$0xff] %vm217, %v1020
      %1119 = vst.msk [vmem:[%s172 + $0x80] sm:$0xff] %vm217, %v1025
      %1120 = vst.msk [vmem:[%s172 + $0x88] sm:$0xff] %vm217, %v1030
      %1121 = vst.msk [vmem:[%s172 + $0x90] sm:$0xff] %vm217, %v1035
      %1122 = vst.msk [vmem:[%s172 + $0x98] sm:$0xff] %vm217, %v1040
      %1123 = vst.msk [vmem:[%s172 + $0xa0] sm:$0xff] %vm217, %v1045
      %1124 = vst.msk [vmem:[%s172 + $0xa8] sm:$0xff] %vm217, %v1050
      %1125 = vst.msk [vmem:[%s172 + $0xb0] sm:$0xff] %vm217, %v1055
      %1126 = vst.msk [vmem:[%s172 + $0xb8] sm:$0xff] %vm217, %v1060
      %1127 = vst.msk [vmem:[%s172 + $0xc0] sm:$0xff] %vm217, %v1065
      %1128 = vst.msk [vmem:[%s172 + $0xc8] sm:$0xff] %vm217, %v1070
      %1129 = vst.msk [vmem:[%s172 + $0xd0] sm:$0xff] %vm217, %v1075
      %1130 = vst.msk [vmem:[%s172 + $0xd8] sm:$0xff] %vm217, %v1080
      %1131 = vst.msk [vmem:[%s172 + $0xe0] sm:$0xff] %vm217, %v1085
      %1132 = vst.msk [vmem:[%s172 + $0xe8] sm:$0xff] %vm217, %v1090
      %1133 = vst.msk [vmem:[%s172 + $0xf0] sm:$0xff] %vm217, %v1095
      %1134 = vst.msk [vmem:[%s172 + $0xf8] sm:$0xff] %vm217, %v1100
      %s1135 = smul.u32 32, %s14
      %p1136 = scmp.lt.s32.totalorder %s1135, 63
      %s1137 = scalar_select %p1136, %s1135, 63
      %s1138 = smul.addr %s1137, 8
      %s1139 = scalar_lea.vmem %s3, %s1138
      // Predicated region
      $region33: #{tpu_custom_call.1} parent=31 // pred_check
        %p1140 = pneg %p100
      $region34: #{tpu_custom_call.1} parent=31 // pred_check_branch
        %1142 = sbr.rel (%p1140) target = $region36
      $region35: #{tpu_custom_call.1} parent=31 // pred_region
        %s1143 = smul.u32 32, %s14
      $region36: #{tpu_custom_call.1} parent=31 // pred_fallthru
        _
    $region32: #{tpu_custom_call.1} parent=5 // pred_fallthru
      _
    %p1144 = scmp.le.s32.totalorder 2, %s9
    // Predicated region
    $region37: #{tpu_custom_call.1} parent=5 // pred_check
      %p1145 = pneg %p1144
    $region38: #{tpu_custom_call.1} parent=5 // pred_check_branch
      %1147 = sbr.rel (%p1145) target = $region40
    $region39: #{tpu_custom_call.1} parent=5 // pred_region
      %s1148 = ssub.s32 %s9, 2
      // Predicated region
      $region41: #{tpu_custom_call.1} parent=39 // pred_check
        %p1149 = pneg %p106
      $region42: #{tpu_custom_call.1} parent=39 // pred_check_branch
        %1151 = sbr.rel (%p1149) target = $region44
      $region43: #{tpu_custom_call.1} parent=39 // pred_region
        %s1152 = smul.u32 32, %s15
        %p1153 = scmp.lt.s32.totalorder %s1152, 63
        %s1154 = scalar_select %p1153, %s1152, 63
        %s1155 = smul.addr %s1154, 8
        %s1156 = scalar_lea.vmem %s3, %s1155
      $region44: #{tpu_custom_call.1} parent=39 // pred_fallthru
        _
    $region40: #{tpu_custom_call.1} parent=5 // pred_fallthru
      _
  $region6: #{tpu_custom_call.1} parent=0 // loop_footer
    %s13 = sadd.s32 1, %s9
  $region7: #{tpu_custom_call.1} parent=0 // loop_footer_branch
    %8 = sbr.rel target = $region3
  $region8: #{tpu_custom_call.1} parent=0 // loop_exit
    _

</llo_original>
